<compile_context>
chip_gen: v7x
topology: tpu7x:2x2x1
jax: 0.10.0
libtpu: 0.0.40
codegen_flags: <defaults>
</compile_context>

<pallas_src>
import functools

import jax
import jax.numpy as jnp
from jax.experimental import pallas as pl
from jax.experimental.pallas import tpu as pltpu


def _round_up(x, m):
    return (x + m - 1) // m * m


_TR = 256            # projection row tile
_TQ = 256            # attention query-row tile
_TK = 512            # attention key tile (node padding granularity)
_VMEM_LIMIT = 32 * 1024 * 1024   # safe on v5e/v6e/v7x; kernels use far less


# ---------------------------------------------------------------------------
# Kernel 1: projection — one MXU matmul emits [h_prime | s] plus transposed
# bf16 keys, lane-padded to HDp (multiple of 128) for dense stores.
# ---------------------------------------------------------------------------
def _project_kernel(x_ref, w_ref, s_ref, hp_ref, hpT_ref, *, hdp):
    cat = jnp.dot(x_ref[...], w_ref[...],
                  preferred_element_type=jnp.float32)      # (tr, 2*hdp)
    hp = cat[:, :hdp]
    s_ref[...] = cat[:, hdp:].astype(jnp.bfloat16)          # queries (s = hp @ A)
    hp_ref[...] = hp.astype(jnp.bfloat16)                   # values
    hpT_ref[...] = hp.T.astype(jnp.bfloat16)                # keys, transposed once


def gat_project(x_p, w_cat, *, hdp, row_tile=_TR):
    np_, fp = x_p.shape
    tr = min(row_tile, np_)
    grid = (np_ // tr,)
    kernel = functools.partial(_project_kernel, hdp=hdp)
    return pl.pallas_call(
        kernel,
        out_shape=(
            jax.ShapeDtypeStruct((np_, hdp), jnp.bfloat16),   # s
            jax.ShapeDtypeStruct((np_, hdp), jnp.bfloat16),   # hp
            jax.ShapeDtypeStruct((hdp, np_), jnp.bfloat16),   # hp^T
        ),
        grid=grid,
        in_specs=[
            pl.BlockSpec((tr, fp), lambda i: (i, 0)),
            pl.BlockSpec((fp, 2 * hdp), lambda i: (0, 0)),
        ],
        out_specs=(
            pl.BlockSpec((tr, hdp), lambda i: (i, 0)),
            pl.BlockSpec((tr, hdp), lambda i: (i, 0)),
            pl.BlockSpec((hdp, tr), lambda i: (0, i)),
        ),
        compiler_params=pltpu.CompilerParams(
            dimension_semantics=("parallel",),
            vmem_limit_bytes=_VMEM_LIMIT),
    )(x_p, w_cat)


# ---------------------------------------------------------------------------
# Kernel 2: attention — key-tiled with an f32 VMEM accumulator (P3 pattern).
# ---------------------------------------------------------------------------
def _attn_multi_head_kernel(s_ref, kT_ref, v_ref, out_ref, acc_ref, *,
                            num_heads, d, alpha, apply_elu):
    ki = pl.program_id(1)

    @pl.when(ki == 0)
    def _():
        acc_ref[...] = jnp.zeros_like(acc_ref)

    s = s_ref[...]                       # (tq, hdp) bf16 queries
    kT = kT_ref[...]                     # (hdp, tk) bf16 keys (pre-transposed)

    # Per-head scores with LeakyReLU(alpha); running max over heads.
    es = []
    m = None
    for h in range(num_heads):           # static unroll, H is small
        lo = h * d
        e_h = jnp.dot(s[:, lo:lo + d], kT[lo:lo + d, :],
                      preferred_element_type=jnp.float32)   # (tq, tk)
        e_h = jnp.where(e_h >= 0, e_h, alpha * e_h)
        es.append(e_h)
        m = e_h if m is None else jnp.maximum(m, e_h)

    # Softmax over the head axis (pointwise in (query, key) — no online trick
    # needed, key tiles are independent).
    denom = None
    for h in range(num_heads):
        es[h] = jnp.exp(es[h] - m)
        denom = es[h] if denom is None else denom + es[h]
    inv = pl.reciprocal(denom, approx=True)                  # EUP slot

    # TODO(synk): F.dropout(p=0.6, training=True) omitted — eval-mode identity.

    v = v_ref[...]                       # (tk, hdp) bf16 values
    for h in range(num_heads):
        lo = h * d
        attn_h = (es[h] * inv).astype(jnp.bfloat16)
        acc_ref[:, lo:lo + d] += jnp.dot(attn_h, v[:, lo:lo + d],
                                         preferred_element_type=jnp.float32)

    @pl.when(ki == pl.num_programs(1) - 1)
    def _():
        out = acc_ref[...]
        if apply_elu:                    # F.elu, alpha=1 (overflow-safe exp)
            out = jnp.where(out > 0, out,
                            jnp.exp(jnp.minimum(out, 0.0)) - 1.0)
        out_ref[...] = out.astype(out_ref.dtype)


def _attn_single_head_kernel(v_ref, out_ref, acc_ref, *, apply_elu):
    # With a single head, softmax over the head axis is exactly 1, so the
    # attention-weighted sum degenerates to the key-row sum of h_prime
    # broadcast to every query row (attention params cancel out exactly).
    ki = pl.program_id(1)

    @pl.when(ki == 0)
    def _():
        acc_ref[...] = jnp.zeros_like(acc_ref)

    v = v_ref[...].astype(jnp.float32)                     # (tk, hdp)
    colsum = jnp.sum(v, axis=0, keepdims=True)             # (1, hdp)
    acc_ref[...] += jnp.broadcast_to(colsum, acc_ref.shape)

    @pl.when(ki == pl.num_programs(1) - 1)
    def _():
        out = acc_ref[...]
        if apply_elu:
            out = jnp.where(out > 0, out,
                            jnp.exp(jnp.minimum(out, 0.0)) - 1.0)
        out_ref[...] = out.astype(out_ref.dtype)


def gat_attention(s_bf, hp_bf, hpT_bf, *, num_heads, d, apply_elu,
                  alpha=0.2):
    np_, hdp = hp_bf.shape
    tq = min(_TQ, np_)
    tk = min(_TK, np_)
    grid = (np_ // tq, np_ // tk)

    out_shape = jax.ShapeDtypeStruct((np_, hdp), jnp.float32)
    out_spec = pl.BlockSpec((tq, hdp), lambda qi, ki: (qi, 0))
    scratch = [pltpu.VMEM((tq, hdp), jnp.float32)]
    cparams = pltpu.CompilerParams(
        dimension_semantics=("parallel", "arbitrary"),
        vmem_limit_bytes=_VMEM_LIMIT)

    if num_heads == 1:
        kernel = functools.partial(_attn_single_head_kernel,
                                   apply_elu=apply_elu)
        return pl.pallas_call(
            kernel,
            out_shape=out_shape,
            grid=grid,
            in_specs=[pl.BlockSpec((tk, hdp), lambda qi, ki: (ki, 0))],
            out_specs=out_spec,
            scratch_shapes=scratch,
            compiler_params=cparams,
        )(hp_bf)

    kernel = functools.partial(_attn_multi_head_kernel, num_heads=num_heads,
                               d=d, alpha=alpha, apply_elu=apply_elu)
    cost = pl.CostEstimate(
        flops=int(4 * np_ * np_ * num_heads * d),
        transcendentals=int(num_heads * np_ * np_),
        bytes_accessed=int(2 * np_ * hdp * (2 * (np_ // tq) + 1)
                           + 4 * np_ * hdp),
    )
    return pl.pallas_call(
        kernel,
        out_shape=out_shape,
        grid=grid,
        in_specs=[
            pl.BlockSpec((tq, hdp), lambda qi, ki: (qi, 0)),   # s (queries)
            pl.BlockSpec((hdp, tk), lambda qi, ki: (0, ki)),   # hp^T (keys)
            pl.BlockSpec((tk, hdp), lambda qi, ki: (ki, 0)),   # hp (values)
        ],
        out_specs=out_spec,
        scratch_shapes=scratch,
        compiler_params=cparams,
        cost_estimate=cost,
    )(s_bf, hpT_bf, hp_bf)


# ---------------------------------------------------------------------------
# Layer wrapper: pad to TPU-friendly shapes, fold A into W, run both kernels.
# ---------------------------------------------------------------------------
def gat_layer(x, w_packed, a_block, *, num_heads, apply_elu=False):
    n, f_in = x.shape
    hd = w_packed.shape[1]
    d = hd // num_heads
    hdp = _round_up(hd, 128)            # lane-dense slabs / output stores
    fp = _round_up(f_in, 8)
    np_ = _round_up(n, _TK)             # divisible by both _TQ and _TK

    x_p = jnp.pad(x.astype(jnp.float32), ((0, np_ - n), (0, fp - f_in)))

    # Fold per-head attention matrices into the projection weights (host side).
    wa = w_packed @ a_block             # (f_in, hd)
    w_cat = jnp.zeros((fp, 2 * hdp), jnp.float32)
    w_cat = w_cat.at[:f_in, :hd].set(w_packed)
    w_cat = w_cat.at[:f_in, hdp:hdp + hd].set(wa)

    s_bf, hp_bf, hpT_bf = gat_project(x_p, w_cat, hdp=hdp)
    out_p = gat_attention(s_bf, hp_bf, hpT_bf, num_heads=num_heads, d=d,
                          apply_elu=apply_elu)
    return out_p[:n, :hd]


# ---------------------------------------------------------------------------
# Parameter packing / init (plain JAX, host-side)
# ---------------------------------------------------------------------------
def _block_diag(att):
    """(H, d, d) per-head attention params -> (H*d, H*d) block-diagonal."""
    h, d, _ = att.shape
    out = jnp.zeros((h * d, h * d), att.dtype)
    for i in range(h):
        out = out.at[i * d:(i + 1) * d, i * d:(i + 1) * d].set(att[i])
    return out


def init_gat_params(key, in_features, hidden_features, out_features, num_heads):
    k1, k2, k3, k4 = jax.random.split(key, 4)
    d1 = hidden_features // num_heads
    d2 = out_features                   # layer 2 has a single head
    # layer1: Linear(in_features, hidden_features, bias=False), H heads
    w1 = jax.random.normal(k1, (hidden_features, in_features), jnp.float32) * 0.3
    att1 = jax.random.normal(k2, (num_heads, d1, d1), jnp.float32) * 0.3
    # layer2: Linear(hidden_features, out_features, bias=False), 1 head
    w2 = jax.random.normal(k3, (out_features, hidden_features), jnp.float32) * 0.3
    att2 = jax.random.normal(k4, (1, d2, d2), jnp.float32) * 0.3
    # torch Linear weight (out_f, in_f) -> (in_f, out_f); heads are contiguous
    # d-wide column chunks, matching h.view(N, H, d).
    return ((w1.T, _block_diag(att1), num_heads),
            (w2.T, _block_diag(att2), 1))


def gat_forward(x, adj, params):
    del adj                              # the reference forward never uses it
    (w1, a1, h1), (w2, a2, h2) = params
    h = gat_layer(x, w1, a1, num_heads=h1, apply_elu=True)   # layer1 + F.elu
    out = gat_layer(h, w2, a2, num_heads=h2, apply_elu=False)  # layer2
    return out


if __name__ == "__main__":
    in_features, hidden_features, out_features = 3, 8, 2
    num_heads, num_nodes = 4, 5

    key = jax.random.PRNGKey(0)
    kx, kp = jax.random.split(key)

    x = jax.random.uniform(kx, (num_nodes, in_features), dtype=jnp.float32)
    adj = jnp.eye(num_nodes, dtype=jnp.float32)

    params = init_gat_params(kp, in_features, hidden_features, out_features,
                             num_heads)

    out = gat_forward(x, adj, params)
    out = jax.block_until_ready(out)
    assert out.shape == (num_nodes, out_features)
    assert out.dtype == jnp.float32
    print("KERNEL_OK")
</pallas_src>

<mosaic_0001>
module attributes {stable_mosaic.version = 11 : i64} {
  func.func @_project_kernel(%arg0: i32, %arg1: memref<256x8xf32, #tpu.memory_space<vmem>>, %arg2: memref<8x256xf32, #tpu.memory_space<vmem>>, %arg3: memref<256x128xbf16, #tpu.memory_space<vmem>>, %arg4: memref<256x128xbf16, #tpu.memory_space<vmem>>, %arg5: memref<128x256xbf16, #tpu.memory_space<vmem>>) attributes {dimension_semantics = [#tpu.dimension_semantics<parallel>], iteration_bounds = array<i64: 2>, scalar_prefetch = 0 : i64, scratch_operands = 0 : i64, tpu.core_type = #tpu.core_type<tc>, window_params = [{transform_indices = @transform_0, window_bounds = array<i64: 256, 8>}, {pipeline_mode = #tpu.pipeline_mode<synchronous>, transform_indices = @transform_1, window_bounds = array<i64: 8, 256>}, {transform_indices = @transform_2, window_bounds = array<i64: 256, 128>}, {transform_indices = @transform_3, window_bounds = array<i64: 256, 128>}, {transform_indices = @transform_4, window_bounds = array<i64: 128, 256>}]} {
    %c0 = arith.constant 0 : index
    %c0_0 = arith.constant 0 : index
    %0 = vector.load %arg1[%c0, %c0_0] : memref<256x8xf32, #tpu.memory_space<vmem>>, vector<256x8xf32>
    %c0_1 = arith.constant 0 : index
    %c0_2 = arith.constant 0 : index
    %1 = vector.load %arg2[%c0_1, %c0_2] : memref<8x256xf32, #tpu.memory_space<vmem>>, vector<8x256xf32>
    %cst = arith.constant dense<0.000000e+00> : vector<256x256xf32>
    %2 = tpu.matmul %0, %1, %cst {dimension_numbers = #tpu.dot_dimension_numbers<[1], [0], [0], [1], [0, 0, 1, 1], [], []>} : vector<256x8xf32>, vector<8x256xf32>, vector<256x256xf32> -> vector<256x256xf32>
    %3 = vector.extract_strided_slice %2 {offsets = [0, 0], sizes = [256, 128], strides = [1, 1]} : vector<256x256xf32> to vector<256x128xf32>
    %4 = vector.extract_strided_slice %2 {offsets = [0, 128], sizes = [256, 128], strides = [1, 1]} : vector<256x256xf32> to vector<256x128xf32>
    %5 = arith.truncf %4 : vector<256x128xf32> to vector<256x128xbf16>
    %c0_3 = arith.constant 0 : index
    %c0_4 = arith.constant 0 : index
    %6 = vector.load %arg3[%c0_3, %c0_4] : memref<256x128xbf16, #tpu.memory_space<vmem>>, vector<256x128xbf16>
    tpu.vector_store %arg3[%c0_3, %c0_4], %5 {strides = array<i32>} : memref<256x128xbf16, #tpu.memory_space<vmem>>, vector<256x128xbf16>,
    %7 = arith.truncf %3 : vector<256x128xf32> to vector<256x128xbf16>
    %c0_5 = arith.constant 0 : index
    %c0_6 = arith.constant 0 : index
    %8 = vector.load %arg4[%c0_5, %c0_6] : memref<256x128xbf16, #tpu.memory_space<vmem>>, vector<256x128xbf16>
    tpu.vector_store %arg4[%c0_5, %c0_6], %7 {strides = array<i32>} : memref<256x128xbf16, #tpu.memory_space<vmem>>, vector<256x128xbf16>,
    %9 = tpu.transpose %3, [1, 0] : vector<256x128xf32> -> vector<128x256xf32>
    %10 = arith.truncf %9 : vector<128x256xf32> to vector<128x256xbf16>
    %c0_7 = arith.constant 0 : index
    %c0_8 = arith.constant 0 : index
    %11 = vector.load %arg5[%c0_7, %c0_8] : memref<128x256xbf16, #tpu.memory_space<vmem>>, vector<128x256xbf16>
    tpu.vector_store %arg5[%c0_7, %c0_8], %10 {strides = array<i32>} : memref<128x256xbf16, #tpu.memory_space<vmem>>, vector<128x256xbf16>,
    return
  }
  func.func @transform_0(%arg0: i32) -> (i32, i32) {
    %c0_i32 = arith.constant 0 : i32
    %c0_i32_0 = arith.constant 0 : i32
    return %arg0, %c0_i32 : i32, i32
  }
  func.func @transform_1(%arg0: i32) -> (i32, i32) {
    %c0_i32 = arith.constant 0 : i32
    %c0_i32_0 = arith.constant 0 : i32
    %c0_i32_1 = arith.constant 0 : i32
    return %c0_i32, %c0_i32_0 : i32, i32
  }
  func.func @transform_2(%arg0: i32) -> (i32, i32) {
    %c0_i32 = arith.constant 0 : i32
    %c0_i32_0 = arith.constant 0 : i32
    return %arg0, %c0_i32 : i32, i32
  }
  func.func @transform_3(%arg0: i32) -> (i32, i32) {
    %c0_i32 = arith.constant 0 : i32
    %c0_i32_0 = arith.constant 0 : i32
    return %arg0, %c0_i32 : i32, i32
  }
  func.func @transform_4(%arg0: i32) -> (i32, i32) {
    %c0_i32 = arith.constant 0 : i32
    %c0_i32_0 = arith.constant 0 : i32
    return %c0_i32, %arg0 : i32, i32
  }
}

</mosaic_0001>

<llo_original>
// kernel: tpu_custom_call.1
$region0: #{tpu_custom_call.1}
  #allocation0 [shape = 'u32[]', space=smem, size = 0x4, offset = 0x4, fixed_abs, tag = 'smem constant byte address 0x4 - core index']
  #allocation1 [shape = 'u32[144,128]{1,0:T(1,128)}', space=vmem, size = 0x12000, scoped, tag = 'internal scratch']
  %s0 = inlined_call_operand.vmem [shape: f32[512,8], index: 0, kind: input, shape index: {}]
  %s1 = inlined_call_operand.vmem [shape: f32[8,256], index: 1, kind: input, shape index: {}]
  %s2 = inlined_call_operand.hbm [shape: bf16[512,128], index: 2, kind: output, shape index: {0}]
  %s3 = inlined_call_operand.hbm [shape: bf16[512,128], index: 3, kind: output, shape index: {1}]
  %s4 = inlined_call_operand.hbm [shape: bf16[128,512], index: 4, kind: output, shape index: {2}]
  %5 = xla_tuple %s2, %s3, %s4
  %s6 = sld [smem:[#allocation0]]
  $region57: #{tpu_custom_call.1} parent=0
    _
  %s8 = ssub.s32 1, %s6
  %s9 = scalar_select 0, %s8, %s6
  $region1: #{tpu_custom_call.1} parent=0
    #allocation2 [shape = 'u8[131072]{0}', space=vmem, size = 0x20000, scoped, tag = 'output window, operand 0']
    #allocation3 [shape = 's32[2]{0}', space=sflag, size = 0x8, scoped, tag = 'scoped memory for tpu_custom_call.1']
    #allocation4 [shape = 'u8[131072]{0}', space=vmem, size = 0x20000, scoped, tag = 'output window, operand 1']
    #allocation5 [shape = 's32[2]{0}', space=sflag, size = 0x8, scoped, tag = 'scoped memory for tpu_custom_call.1']
    #allocation6 [shape = 'u8[131072]{0}', space=vmem, size = 0x20000, scoped, tag = 'output window, operand 2']
    %10 = vsyncpa [#allocation3], 0
    %s11 = scalar_lea.sflag [#allocation3], 1
    %12 = vsyncpa %s11, 0
    %13 = vsyncpa [#allocation5], 0
    %s14 = scalar_lea.sflag [#allocation5], 1
    %15 = vsyncpa %s14, 0
    loop: start=0, step=1, limit=4
    $region2: #{tpu_custom_call.1} parent=1 // loop_pre_header
      _
    $region3: #{tpu_custom_call.1} parent=1 // loop_header
      %s17 = sphi 0, %s21
      %p18 = scmp.ge.s32.totalorder %s17, 4
      %s27 = sphi 0, %s29
      %s30 = sphi 0, %s27
      %s31 = sphi 0, %s30
      %s47 = sphi 0, %s31
      %s51 = sphi 0, %s51
      %s53 = sphi 0, %s51
      %s54 = sphi 0, %s53
      %s68 = sphi 0, %s54
      %s74 = sphi 0, %s76
      %s77 = sphi 0, %s74
      %s78 = sphi 0, %s77
      %s94 = sphi 0, %s78
      %s100 = sphi 0, %s102
      %s103 = sphi 0, %s100
      %s104 = sphi 0, %s103
      %s120 = sphi 0, %s104
      %s126 = sphi 0, %s128
      %s129 = sphi 0, %s126
      %s130 = sphi 0, %s129
      %s146 = sphi 0, %s130
    $region4: #{tpu_custom_call.1} parent=1 // loop_header_branch
      %20 = sbr.rel (%p18) target = $region8
    $region5: #{tpu_custom_call.1} parent=1 // loop_body
      %s22 = ssub.s32 %s17, 1
      %s23 = ssub.s32 %s17, 2
      %s24 = sadd.s32 %s17, 1
      %s25 = ssub.s32 %s17, %s24
      %p26 = scmp.eq.s32.totalorder %s25, 0
      %s28 = sadd.s32 %s27, 1
      %s29 = scalar_select %p26, %s27, %s28
      %p32 = pneg %p26
      %p33 = scmp.eq.s32.totalorder %s17, 1
      %p34 = por %p32, %p33
      %p35 = scmp.ne.s32.totalorder %s27, %s30
      %p36 = scmp.eq.s32.totalorder %s17, 0
      %p37 = por %p35, %p36
      %p38 = scmp.ne.s32.totalorder %s27, %s30
      %p39 = scmp.eq.s32.totalorder %s22, 1
      %p40 = por %p38, %p39
      %p41 = scmp.ne.s32.totalorder %s30, %s31
      %p42 = scmp.eq.s32.totalorder %s22, 0
      %p43 = por %p41, %p42
      %p44 = scmp.ne.s32.totalorder %s30, %s31
      %p45 = scmp.eq.s32.totalorder %s23, 1
      %p46 = por %p44, %p45
      %p48 = scmp.ne.s32.totalorder %s31, %s47
      %p49 = scmp.eq.s32.totalorder %s23, 0
      %p50 = por %p48, %p49
      %s52 = sadd.s32 %s51, 1
      %p55 = scmp.eq.s32.totalorder %s17, 1
      %p56 = scmp.ne.s32.totalorder %s51, %s53
      %p57 = scmp.eq.s32.totalorder %s17, 0
      %p58 = por %p56, %p57
      %p59 = scmp.ne.s32.totalorder %s51, %s53
      %p60 = scmp.eq.s32.totalorder %s22, 1
      %p61 = por %p59, %p60
      %p62 = scmp.ne.s32.totalorder %s53, %s54
      %p63 = scmp.eq.s32.totalorder %s22, 0
      %p64 = por %p62, %p63
      %p65 = scmp.ne.s32.totalorder %s53, %s54
      %p66 = scmp.eq.s32.totalorder %s23, 1
      %p67 = por %p65, %p66
      %p69 = scmp.ne.s32.totalorder %s54, %s68
      %p70 = scmp.eq.s32.totalorder %s23, 0
      %p71 = por %p69, %p70
      %s72 = ssub.s32 %s17, %s24
      %p73 = scmp.eq.s32.totalorder %s72, 0
      %s75 = sadd.s32 %s74, 1
      %s76 = scalar_select %p73, %s74, %s75
      %p79 = pneg %p73
      %p80 = scmp.eq.s32.totalorder %s17, 1
      %p81 = por %p79, %p80
      %p82 = scmp.ne.s32.totalorder %s74, %s77
      %p83 = scmp.eq.s32.totalorder %s17, 0
      %p84 = por %p82, %p83
      %p85 = scmp.ne.s32.totalorder %s74, %s77
      %p86 = scmp.eq.s32.totalorder %s22, 1
      %p87 = por %p85, %p86
      %p88 = scmp.ne.s32.totalorder %s77, %s78
      %p89 = scmp.eq.s32.totalorder %s22, 0
      %p90 = por %p88, %p89
      %p91 = scmp.ne.s32.totalorder %s77, %s78
      %p92 = scmp.eq.s32.totalorder %s23, 1
      %p93 = por %p91, %p92
      %p95 = scmp.ne.s32.totalorder %s78, %s94
      %p96 = scmp.eq.s32.totalorder %s23, 0
      %p97 = por %p95, %p96
      %s98 = ssub.s32 %s17, %s24
      %p99 = scmp.eq.s32.totalorder %s98, 0
      %s101 = sadd.s32 %s100, 1
      %s102 = scalar_select %p99, %s100, %s101
      %p105 = pneg %p99
      %p106 = scmp.eq.s32.totalorder %s17, 1
      %p107 = por %p105, %p106
      %p108 = scmp.ne.s32.totalorder %s100, %s103
      %p109 = scmp.eq.s32.totalorder %s17, 0
      %p110 = por %p108, %p109
      %p111 = scmp.ne.s32.totalorder %s100, %s103
      %p112 = scmp.eq.s32.totalorder %s22, 1
      %p113 = por %p111, %p112
      %p114 = scmp.ne.s32.totalorder %s103, %s104
      %p115 = scmp.eq.s32.totalorder %s22, 0
      %p116 = por %p114, %p115
      %p117 = scmp.ne.s32.totalorder %s103, %s104
      %p118 = scmp.eq.s32.totalorder %s23, 1
      %p119 = por %p117, %p118
      %p121 = scmp.ne.s32.totalorder %s104, %s120
      %p122 = scmp.eq.s32.totalorder %s23, 0
      %p123 = por %p121, %p122
      %s124 = ssub.s32 %s17, %s24
      %p125 = scmp.eq.s32.totalorder %s124, 0
      %s127 = sadd.s32 %s126, 1
      %s128 = scalar_select %p125, %s126, %s127
      %p131 = pneg %p125
      %p132 = scmp.eq.s32.totalorder %s17, 1
      %p133 = por %p131, %p132
      %p134 = scmp.ne.s32.totalorder %s126, %s129
      %p135 = scmp.eq.s32.totalorder %s17, 0
      %p136 = por %p134, %p135
      %p137 = scmp.ne.s32.totalorder %s126, %s129
      %p138 = scmp.eq.s32.totalorder %s22, 1
      %p139 = por %p137, %p138
      %p140 = scmp.ne.s32.totalorder %s129, %s130
      %p141 = scmp.eq.s32.totalorder %s22, 0
      %p142 = por %p140, %p141
      %p143 = scmp.ne.s32.totalorder %s129, %s130
      %p144 = scmp.eq.s32.totalorder %s23, 1
      %p145 = por %p143, %p144
      %p147 = scmp.ne.s32.totalorder %s130, %s146
      %p148 = scmp.eq.s32.totalorder %s23, 0
      %p149 = por %p147, %p148
      %p150 = scmp.le.s32.totalorder 1, %s17
      %p151 = scmp.lt.s32.totalorder %s17, 3
      %p152 = pnand %p150, %p151
      %p153 = pneg %p152
      // Predicated region
      $region9: #{tpu_custom_call.1} parent=5 // pred_check
        _
      $region10: #{tpu_custom_call.1} parent=5 // pred_check_branch
        %155 = sbr.rel (%p152) target = $region12
      $region11: #{tpu_custom_call.1} parent=5 // pred_region
        %s156 = ssub.s32 %s17, 1
        // Predicated region
        $region13: #{tpu_custom_call.1} parent=11 // pred_check
          %p157 = pneg %p64
        $region14: #{tpu_custom_call.1} parent=11 // pred_check_branch
          %159 = sbr.rel (%p157) target = $region16
        $region15: #{tpu_custom_call.1} parent=11 // pred_region
          _
        $region16: #{tpu_custom_call.1} parent=11 // pred_fallthru
          _
      $region12: #{tpu_custom_call.1} parent=5 // pred_fallthru
        _
      %p160 = scmp.lt.s32.totalorder %s17, 2
      // Predicated region
      $region17: #{tpu_custom_call.1} parent=5 // pred_check
        %p161 = pneg %p160
      $region18: #{tpu_custom_call.1} parent=5 // pred_check_branch
        %163 = sbr.rel (%p161) target = $region20
      $region19: #{tpu_custom_call.1} parent=5 // pred_region
        // Predicated region
        $region21: #{tpu_custom_call.1} parent=19 // pred_check
          %p164 = pneg %p37
        $region22: #{tpu_custom_call.1} parent=19 // pred_check_branch
          %166 = sbr.rel (%p164) target = $region24
        $region23: #{tpu_custom_call.1} parent=19 // pred_region
          %s167 = smul.u32 32, %s17
          %p168 = scmp.lt.s32.totalorder %s167, 63
          %s169 = scalar_select %p168, %s167, 63
          %s170 = smul.addr %s169, 8
          %s171 = scalar_lea.vmem %s0, %s170
          %s172 = smul.u32 32, %s17
        $region24: #{tpu_custom_call.1} parent=19 // pred_fallthru
          _
      $region20: #{tpu_custom_call.1} parent=5 // pred_fallthru
        _
      %p173 = scmp.le.s32.totalorder 1, %s17
      %p174 = scmp.lt.s32.totalorder %s17, 3
      %p175 = pnand %p173, %p174
      %p176 = pneg %p175
      // Predicated region
      $region25: #{tpu_custom_call.1} parent=5 // pred_check
        _
      $region26: #{tpu_custom_call.1} parent=5 // pred_check_branch
        %178 = sbr.rel (%p175) target = $region28
      $region27: #{tpu_custom_call.1} parent=5 // pred_region
        %s179 = ssub.s32 %s17, 1
        %s180 = smul.u32 32, %s22
        %p181 = scmp.lt.s32.totalorder %s180, 63
        %s182 = scalar_select %p181, %s180, 63
        %s183 = smul.addr %s182, 8
        %s184 = scalar_lea.vmem %s0, %s183
        %p185 = pneg %p43
        %p186 = pneg %p40
        %p187 = pneg %p64
        %p188 = pneg %p61
        %p189 = pneg %p90
        %p190 = pneg %p87
        %s191 = sand.u32 %s77, 1
        %s192 = scalar_lea.sflag [#allocation3], %s191
        %s193 = sand.u32 %s77, 1
        %s194 = smul.addr %s193, 128
        %s195 = scalar_lea.vmem [#allocation2], %s194
        %p196 = pneg %p116
        %p197 = pneg %p113
        %s198 = sand.u32 %s22, 1
        %s199 = scalar_lea.sflag [#allocation5], %s198
        %s200 = sand.u32 %s103, 1
        %s201 = smul.addr %s200, 128
        %s202 = scalar_lea.vmem [#allocation4], %s201
        %p203 = pneg %p142
        %p204 = pneg %p139
        %s205 = sand.u32 %s22, 1
        %s206 = scalar_lea.sflag [#allocation5], %s205
        %s207 = sand.u32 %s129, 1
        %s208 = smul.addr %s207, 128
        %s209 = scalar_lea.vmem [#allocation6], %s208
        %s210 = smul.u32 32, %s22
        %p211 = scmp.lt.s32.totalorder %s210, 63
        %s212 = scalar_select %p211, %s210, 63
        %s213 = smul.addr %s212, 8
        %s214 = scalar_lea.vmem %s0, %s213
        %s215 = smul.u32 32, %s22
        %s216 = smul.u32 32, %s22
        %s217 = smul.u32 32, %s22
        %s218 = smul.u32 2, %s22
        %v219 = vld [vmem:[%s214] sm:$0xff]
        %v220 = vld [vmem:[%s214 + $0x8] sm:$0xff]
        %v221 = vld [vmem:[%s214 + $0x10] sm:$0xff]
        %v222 = vld [vmem:[%s214 + $0x18] sm:$0xff]
        %v223 = vld [vmem:[%s214 + $0x20] sm:$0xff]
        %v224 = vld [vmem:[%s214 + $0x28] sm:$0xff]
        %v225 = vld [vmem:[%s214 + $0x30] sm:$0xff]
        %v226 = vld [vmem:[%s214 + $0x38] sm:$0xff]
        %v227 = vld [vmem:[%s214 + $0x40] sm:$0xff]
        %v228 = vld [vmem:[%s214 + $0x48] sm:$0xff]
        %v229 = vld [vmem:[%s214 + $0x50] sm:$0xff]
        %v230 = vld [vmem:[%s214 + $0x58] sm:$0xff]
        %v231 = vld [vmem:[%s214 + $0x60] sm:$0xff]
        %v232 = vld [vmem:[%s214 + $0x68] sm:$0xff]
        %v233 = vld [vmem:[%s214 + $0x70] sm:$0xff]
        %v234 = vld [vmem:[%s214 + $0x78] sm:$0xff]
        %v235 = vld [vmem:[%s214 + $0x80] sm:$0xff]
        %v236 = vld [vmem:[%s214 + $0x88] sm:$0xff]
        %v237 = vld [vmem:[%s214 + $0x90] sm:$0xff]
        %v238 = vld [vmem:[%s214 + $0x98] sm:$0xff]
        %v239 = vld [vmem:[%s214 + $0xa0] sm:$0xff]
        %v240 = vld [vmem:[%s214 + $0xa8] sm:$0xff]
        %v241 = vld [vmem:[%s214 + $0xb0] sm:$0xff]
        %v242 = vld [vmem:[%s214 + $0xb8] sm:$0xff]
        %v243 = vld [vmem:[%s214 + $0xc0] sm:$0xff]
        %v244 = vld [vmem:[%s214 + $0xc8] sm:$0xff]
        %v245 = vld [vmem:[%s214 + $0xd0] sm:$0xff]
        %v246 = vld [vmem:[%s214 + $0xd8] sm:$0xff]
        %v247 = vld [vmem:[%s214 + $0xe0] sm:$0xff]
        %v248 = vld [vmem:[%s214 + $0xe8] sm:$0xff]
        %v249 = vld [vmem:[%s214 + $0xf0] sm:$0xff]
        %v250 = vld [vmem:[%s214 + $0xf8] sm:$0xff]
        %v251 = vld [vmem:[%s1] sm:$0xff]
        %v252 = vld [vmem:[%s1 + $0x8] sm:$0xff]
        %vm253 = vcmask 64512
        %v255 = vsel %vm253, %v219, 0
        %v258 = vsel %vm253, %v220, 0
        %v261 = vsel %vm253, %v221, 0
        %v264 = vsel %vm253, %v222, 0
        %v267 = vsel %vm253, %v223, 0
        %v270 = vsel %vm253, %v224, 0
        %v273 = vsel %vm253, %v225, 0
        %v276 = vsel %vm253, %v226, 0
        %v279 = vsel %vm253, %v227, 0
        %v282 = vsel %vm253, %v228, 0
        %v285 = vsel %vm253, %v229, 0
        %v288 = vsel %vm253, %v230, 0
        %v291 = vsel %vm253, %v231, 0
        %v294 = vsel %vm253, %v232, 0
        %v297 = vsel %vm253, %v233, 0
        %v300 = vsel %vm253, %v234, 0
        %v303 = vsel %vm253, %v235, 0
        %v306 = vsel %vm253, %v236, 0
        %v309 = vsel %vm253, %v237, 0
        %v312 = vsel %vm253, %v238, 0
        %v315 = vsel %vm253, %v239, 0
        %v318 = vsel %vm253, %v240, 0
        %v321 = vsel %vm253, %v241, 0
        %v324 = vsel %vm253, %v242, 0
        %v327 = vsel %vm253, %v243, 0
        %v330 = vsel %vm253, %v244, 0
        %v333 = vsel %vm253, %v245, 0
        %v336 = vsel %vm253, %v246, 0
        %v339 = vsel %vm253, %v247, 0
        %v342 = vsel %vm253, %v248, 0
        %v345 = vsel %vm253, %v249, 0
        %v348 = vsel %vm253, %v250, 0
        %350 = vmatprep.subr.mxu0 %v252
        %351 = vmatpush1.msra.mxu0 %v251
        %352 = vmatprep.subr.mxu0 0.0
        %353 = vmatpush1.msra.mxu0 0.0
        %354 = vmatprep.subr.mxu0 0.0
        %355 = vmatpush1.msra.mxu0 0.0
        %356 = vmatprep.subr.mxu0 0.0
        %357 = vmatpush1.msra.mxu0 0.0
        %358 = vmatprep.subr.mxu0 0.0
        %359 = vmatpush1.msra.mxu0 0.0
        %360 = vmatprep.subr.mxu0 0.0
        %361 = vmatpush1.msra.mxu0 0.0
        %362 = vmatprep.subr.mxu0 0.0
        %363 = vmatpush1.msra.mxu0 0.0
        %364 = vmatprep.subr.mxu0 0.0
        %365 = vmatpush1.msra.mxu0 0.0
        %366 = vmatprep.subr.mxu0 0.0
        %367 = vmatpush1.msra.mxu0 0.0
        %368 = vmatprep.subr.mxu0 0.0
        %369 = vmatpush1.msra.mxu0 0.0
        %370 = vmatprep.subr.mxu0 0.0
        %371 = vmatpush1.msra.mxu0 0.0
        %372 = vmatprep.subr.mxu0 0.0
        %373 = vmatpush1.msra.mxu0 0.0
        %374 = vmatprep.subr.mxu0 0.0
        %375 = vmatpush1.msra.mxu0 0.0
        %376 = vmatprep.subr.mxu0 0.0
        %377 = vmatpush1.msra.mxu0 0.0
        %378 = vmatprep.subr.mxu0 0.0
        %379 = vmatpush1.msra.mxu0 0.0
        %380 = vmatprep.subr.mxu0 0.0
        %381 = vmatpush1.msra.mxu0 0.0
        %382 = vmatprep.subr.mxu0 0.0
        %383 = vmatpush1.msra.mxu0 0.0
        %384 = vmatprep.subr.mxu0 0.0
        %385 = vmatpush1.msra.mxu0 0.0
        %386 = vmatprep.subr.mxu0 0.0
        %387 = vmatpush1.msra.mxu0 0.0
        %388 = vmatprep.subr.mxu0 0.0
        %389 = vmatpush1.msra.mxu0 0.0
        %390 = vmatprep.subr.mxu0 0.0
        %391 = vmatpush1.msra.mxu0 0.0
        %392 = vmatprep.subr.mxu0 0.0
        %393 = vmatpush1.msra.mxu0 0.0
        %394 = vmatprep.subr.mxu0 0.0
        %395 = vmatpush1.msra.mxu0 0.0
        %396 = vmatprep.subr.mxu0 0.0
        %397 = vmatpush1.msra.mxu0 0.0
        %398 = vmatprep.subr.mxu0 0.0
        %399 = vmatpush1.msra.mxu0 0.0
        %400 = vmatprep.subr.mxu0 0.0
        %401 = vmatpush1.msra.mxu0 0.0
        %402 = vmatprep.subr.mxu0 0.0
        %403 = vmatpush1.msra.mxu0 0.0
        %404 = vmatprep.subr.mxu0 0.0
        %405 = vmatpush1.msra.mxu0 0.0
        %406 = vmatprep.subr.mxu0 0.0
        %407 = vmatpush1.msra.mxu0 0.0
        %408 = vmatprep.subr.mxu0 0.0
        %409 = vmatpush1.msra.mxu0 0.0
        %410 = vmatprep.subr.mxu0 0.0
        %411 = vmatpush1.msra.mxu0 0.0
        %412 = vmatprep.subr.mxu0 0.0
        %413 = vmatpush1.msra.mxu0 0.0
        %414 = vmatprep.mubr.f32.mxu0 0.0
        %415 = vmatmul.mubr.f32.gmra.mrb[0].mxu0 %v255
        %v416 = vpop.f32.mrb[0].mxu0
        %v417 = vadd.f32 0.0, %v416
        %v418 = vpop.f32.mrb[0].mxu0
        %v419 = vadd.f32 0.0, %v418
        %420 = vmatprep.mubr.f32.mxu0 0.0
        %421 = vmatmul.mubr.f32.gmra.mrb[0].mxu0 %v258
        %v422 = vpop.f32.mrb[0].mxu0
        %v423 = vadd.f32 0.0, %v422
        %v424 = vpop.f32.mrb[0].mxu0
        %v425 = vadd.f32 0.0, %v424
        %426 = vmatprep.mubr.f32.mxu0 0.0
        %427 = vmatmul.mubr.f32.gmra.mrb[0].mxu0 %v261
        %v428 = vpop.f32.mrb[0].mxu0
        %v429 = vadd.f32 0.0, %v428
        %v430 = vpop.f32.mrb[0].mxu0
        %v431 = vadd.f32 0.0, %v430
        %432 = vmatprep.mubr.f32.mxu0 0.0
        %433 = vmatmul.mubr.f32.gmra.mrb[0].mxu0 %v264
        %v434 = vpop.f32.mrb[0].mxu0
        %v435 = vadd.f32 0.0, %v434
        %v436 = vpop.f32.mrb[0].mxu0
        %v437 = vadd.f32 0.0, %v436
        %438 = vmatprep.mubr.f32.mxu0 0.0
        %439 = vmatmul.mubr.f32.gmra.mrb[0].mxu0 %v267
        %v440 = vpop.f32.mrb[0].mxu0
        %v441 = vadd.f32 0.0, %v440
        %v442 = vpop.f32.mrb[0].mxu0
        %v443 = vadd.f32 0.0, %v442
        %444 = vmatprep.mubr.f32.mxu0 0.0
        %445 = vmatmul.mubr.f32.gmra.mrb[0].mxu0 %v270
        %v446 = vpop.f32.mrb[0].mxu0
        %v447 = vadd.f32 0.0, %v446
        %v448 = vpop.f32.mrb[0].mxu0
        %v449 = vadd.f32 0.0, %v448
        %450 = vmatprep.mubr.f32.mxu0 0.0
        %451 = vmatmul.mubr.f32.gmra.mrb[0].mxu0 %v273
        %v452 = vpop.f32.mrb[0].mxu0
        %v453 = vadd.f32 0.0, %v452
        %v454 = vpop.f32.mrb[0].mxu0
        %v455 = vadd.f32 0.0, %v454
        %456 = vmatprep.mubr.f32.mxu0 0.0
        %457 = vmatmul.mubr.f32.gmra.mrb[0].mxu0 %v276
        %v458 = vpop.f32.mrb[0].mxu0
        %v459 = vadd.f32 0.0, %v458
        %v460 = vpop.f32.mrb[0].mxu0
        %v461 = vadd.f32 0.0, %v460
        %462 = vmatprep.mubr.f32.mxu0 0.0
        %463 = vmatmul.mubr.f32.gmra.mrb[0].mxu0 %v279
        %v464 = vpop.f32.mrb[0].mxu0
        %v465 = vadd.f32 0.0, %v464
        %v466 = vpop.f32.mrb[0].mxu0
        %v467 = vadd.f32 0.0, %v466
        %468 = vmatprep.mubr.f32.mxu0 0.0
        %469 = vmatmul.mubr.f32.gmra.mrb[0].mxu0 %v282
        %v470 = vpop.f32.mrb[0].mxu0
        %v471 = vadd.f32 0.0, %v470
        %v472 = vpop.f32.mrb[0].mxu0
        %v473 = vadd.f32 0.0, %v472
        %474 = vmatprep.mubr.f32.mxu0 0.0
        %475 = vmatmul.mubr.f32.gmra.mrb[0].mxu0 %v285
        %v476 = vpop.f32.mrb[0].mxu0
        %v477 = vadd.f32 0.0, %v476
        %v478 = vpop.f32.mrb[0].mxu0
        %v479 = vadd.f32 0.0, %v478
        %480 = vmatprep.mubr.f32.mxu0 0.0
        %481 = vmatmul.mubr.f32.gmra.mrb[0].mxu0 %v288
        %v482 = vpop.f32.mrb[0].mxu0
        %v483 = vadd.f32 0.0, %v482
        %v484 = vpop.f32.mrb[0].mxu0
        %v485 = vadd.f32 0.0, %v484
        %486 = vmatprep.mubr.f32.mxu0 0.0
        %487 = vmatmul.mubr.f32.gmra.mrb[0].mxu0 %v291
        %v488 = vpop.f32.mrb[0].mxu0
        %v489 = vadd.f32 0.0, %v488
        %v490 = vpop.f32.mrb[0].mxu0
        %v491 = vadd.f32 0.0, %v490
        %492 = vmatprep.mubr.f32.mxu0 0.0
        %493 = vmatmul.mubr.f32.gmra.mrb[0].mxu0 %v294
        %v494 = vpop.f32.mrb[0].mxu0
        %v495 = vadd.f32 0.0, %v494
        %v496 = vpop.f32.mrb[0].mxu0
        %v497 = vadd.f32 0.0, %v496
        %498 = vmatprep.mubr.f32.mxu0 0.0
        %499 = vmatmul.mubr.f32.gmra.mrb[0].mxu0 %v297
        %v500 = vpop.f32.mrb[0].mxu0
        %v501 = vadd.f32 0.0, %v500
        %v502 = vpop.f32.mrb[0].mxu0
        %v503 = vadd.f32 0.0, %v502
        %504 = vmatprep.mubr.f32.mxu0 0.0
        %505 = vmatmul.mubr.f32.gmra.mrb[0].mxu0 %v300
        %v506 = vpop.f32.mrb[0].mxu0
        %v507 = vadd.f32 0.0, %v506
        %v508 = vpop.f32.mrb[0].mxu0
        %v509 = vadd.f32 0.0, %v508
        %510 = vmatprep.mubr.f32.mxu0 0.0
        %511 = vmatmul.mubr.f32.gmra.mrb[0].mxu0 %v303
        %v512 = vpop.f32.mrb[0].mxu0
        %v513 = vadd.f32 0.0, %v512
        %v514 = vpop.f32.mrb[0].mxu0
        %v515 = vadd.f32 0.0, %v514
        %516 = vmatprep.mubr.f32.mxu0 0.0
        %517 = vmatmul.mubr.f32.gmra.mrb[0].mxu0 %v306
        %v518 = vpop.f32.mrb[0].mxu0
        %v519 = vadd.f32 0.0, %v518
        %v520 = vpop.f32.mrb[0].mxu0
        %v521 = vadd.f32 0.0, %v520
        %522 = vmatprep.mubr.f32.mxu0 0.0
        %523 = vmatmul.mubr.f32.gmra.mrb[0].mxu0 %v309
        %v524 = vpop.f32.mrb[0].mxu0
        %v525 = vadd.f32 0.0, %v524
        %v526 = vpop.f32.mrb[0].mxu0
        %v527 = vadd.f32 0.0, %v526
        %528 = vmatprep.mubr.f32.mxu0 0.0
        %529 = vmatmul.mubr.f32.gmra.mrb[0].mxu0 %v312
        %v530 = vpop.f32.mrb[0].mxu0
        %v531 = vadd.f32 0.0, %v530
        %v532 = vpop.f32.mrb[0].mxu0
        %v533 = vadd.f32 0.0, %v532
        %534 = vmatprep.mubr.f32.mxu0 0.0
        %535 = vmatmul.mubr.f32.gmra.mrb[0].mxu0 %v315
        %v536 = vpop.f32.mrb[0].mxu0
        %v537 = vadd.f32 0.0, %v536
        %v538 = vpop.f32.mrb[0].mxu0
        %v539 = vadd.f32 0.0, %v538
        %540 = vmatprep.mubr.f32.mxu0 0.0
        %541 = vmatmul.mubr.f32.gmra.mrb[0].mxu0 %v318
        %v542 = vpop.f32.mrb[0].mxu0
        %v543 = vadd.f32 0.0, %v542
        %v544 = vpop.f32.mrb[0].mxu0
        %v545 = vadd.f32 0.0, %v544
        %546 = vmatprep.mubr.f32.mxu0 0.0
        %547 = vmatmul.mubr.f32.gmra.mrb[0].mxu0 %v321
        %v548 = vpop.f32.mrb[0].mxu0
        %v549 = vadd.f32 0.0, %v548
        %v550 = vpop.f32.mrb[0].mxu0
        %v551 = vadd.f32 0.0, %v550
        %552 = vmatprep.mubr.f32.mxu0 0.0
        %553 = vmatmul.mubr.f32.gmra.mrb[0].mxu0 %v324
        %v554 = vpop.f32.mrb[0].mxu0
        %v555 = vadd.f32 0.0, %v554
        %v556 = vpop.f32.mrb[0].mxu0
        %v557 = vadd.f32 0.0, %v556
        %558 = vmatprep.mubr.f32.mxu0 0.0
        %559 = vmatmul.mubr.f32.gmra.mrb[0].mxu0 %v327
        %v560 = vpop.f32.mrb[0].mxu0
        %v561 = vadd.f32 0.0, %v560
        %v562 = vpop.f32.mrb[0].mxu0
        %v563 = vadd.f32 0.0, %v562
        %564 = vmatprep.mubr.f32.mxu0 0.0
        %565 = vmatmul.mubr.f32.gmra.mrb[0].mxu0 %v330
        %v566 = vpop.f32.mrb[0].mxu0
        %v567 = vadd.f32 0.0, %v566
        %v568 = vpop.f32.mrb[0].mxu0
        %v569 = vadd.f32 0.0, %v568
        %570 = vmatprep.mubr.f32.mxu0 0.0
        %571 = vmatmul.mubr.f32.gmra.mrb[0].mxu0 %v333
        %v572 = vpop.f32.mrb[0].mxu0
        %v573 = vadd.f32 0.0, %v572
        %v574 = vpop.f32.mrb[0].mxu0
        %v575 = vadd.f32 0.0, %v574
        %576 = vmatprep.mubr.f32.mxu0 0.0
        %577 = vmatmul.mubr.f32.gmra.mrb[0].mxu0 %v336
        %v578 = vpop.f32.mrb[0].mxu0
        %v579 = vadd.f32 0.0, %v578
        %v580 = vpop.f32.mrb[0].mxu0
        %v581 = vadd.f32 0.0, %v580
        %582 = vmatprep.mubr.f32.mxu0 0.0
        %583 = vmatmul.mubr.f32.gmra.mrb[0].mxu0 %v339
        %v584 = vpop.f32.mrb[0].mxu0
        %v585 = vadd.f32 0.0, %v584
        %v586 = vpop.f32.mrb[0].mxu0
        %v587 = vadd.f32 0.0, %v586
        %588 = vmatprep.mubr.f32.mxu0 0.0
        %589 = vmatmul.mubr.f32.gmra.mrb[0].mxu0 %v342
        %v590 = vpop.f32.mrb[0].mxu0
        %v591 = vadd.f32 0.0, %v590
        %v592 = vpop.f32.mrb[0].mxu0
        %v593 = vadd.f32 0.0, %v592
        %594 = vmatprep.mubr.f32.mxu0 0.0
        %595 = vmatmul.mubr.f32.gmra.mrb[0].mxu0 %v345
        %v596 = vpop.f32.mrb[0].mxu0
        %v597 = vadd.f32 0.0, %v596
        %v598 = vpop.f32.mrb[0].mxu0
        %v599 = vadd.f32 0.0, %v598
        %600 = vmatprep.mubr.f32.mxu0 0.0
        %601 = vmatmul.mubr.f32.gmra.mrb[0].mxu0 %v348
        %v602 = vpop.f32.mrb[0].mxu0
        %v603 = vadd.f32 0.0, %v602
        %v604 = vpop.f32.mrb[0].mxu0
        %v605 = vadd.f32 0.0, %v604
        %606 = vdwg.mxu0
        %v607 = vpack.c.bf16 %v425, %v419
        %v608 = vpack.c.bf16 %v437, %v431
        %v609 = vpack.c.bf16 %v449, %v443
        %v610 = vpack.c.bf16 %v461, %v455
        %v611 = vpack.c.bf16 %v473, %v467
        %v612 = vpack.c.bf16 %v485, %v479
        %v613 = vpack.c.bf16 %v497, %v491
        %v614 = vpack.c.bf16 %v509, %v503
        %v615 = vpack.c.bf16 %v521, %v515
        %v616 = vpack.c.bf16 %v533, %v527
        %v617 = vpack.c.bf16 %v545, %v539
        %v618 = vpack.c.bf16 %v557, %v551
        %v619 = vpack.c.bf16 %v569, %v563
        %v620 = vpack.c.bf16 %v581, %v575
        %v621 = vpack.c.bf16 %v593, %v587
        %v622 = vpack.c.bf16 %v605, %v599
        %v639 = vunpack.c.l.b16 %v607
        %v640 = vunpack.c.h.b16 %v607
        %v641 = vunpack.c.l.b16 %v608
        %v642 = vunpack.c.h.b16 %v608
        %v643 = vunpack.c.l.b16 %v609
        %v644 = vunpack.c.h.b16 %v609
        %v645 = vunpack.c.l.b16 %v610
        %v646 = vunpack.c.h.b16 %v610
        %v647 = vunpack.c.l.b16 %v611
        %v648 = vunpack.c.h.b16 %v611
        %v649 = vunpack.c.l.b16 %v612
        %v650 = vunpack.c.h.b16 %v612
        %v651 = vunpack.c.l.b16 %v613
        %v652 = vunpack.c.h.b16 %v613
        %v653 = vunpack.c.l.b16 %v614
        %v654 = vunpack.c.h.b16 %v614
        %v655 = vunpack.c.l.b16 %v615
        %v656 = vunpack.c.h.b16 %v615
        %v657 = vunpack.c.l.b16 %v616
        %v658 = vunpack.c.h.b16 %v616
        %v659 = vunpack.c.l.b16 %v617
        %v660 = vunpack.c.h.b16 %v617
        %v661 = vunpack.c.l.b16 %v618
        %v662 = vunpack.c.h.b16 %v618
        %v663 = vunpack.c.l.b16 %v619
        %v664 = vunpack.c.h.b16 %v619
        %v665 = vunpack.c.l.b16 %v620
        %v666 = vunpack.c.h.b16 %v620
        %v667 = vunpack.c.l.b16 %v621
        %v668 = vunpack.c.h.b16 %v621
        %v669 = vunpack.c.l.b16 %v622
        %v670 = vunpack.c.h.b16 %v622
        %v671 = vpack.c.b16 %v639, %v639
        %v672 = vpack.c.b16 %v640, %v640
        %v673 = vpack.c.b16 %v641, %v641
        %v674 = vpack.c.b16 %v642, %v642
        %v675 = vpack.c.b16 %v643, %v643
        %v676 = vpack.c.b16 %v644, %v644
        %v677 = vpack.c.b16 %v645, %v645
        %v678 = vpack.c.b16 %v646, %v646
        %v679 = vpack.c.b16 %v647, %v647
        %v680 = vpack.c.b16 %v648, %v648
        %v681 = vpack.c.b16 %v649, %v649
        %v682 = vpack.c.b16 %v650, %v650
        %v683 = vpack.c.b16 %v651, %v651
        %v684 = vpack.c.b16 %v652, %v652
        %v685 = vpack.c.b16 %v653, %v653
        %v686 = vpack.c.b16 %v654, %v654
        %v687 = vpack.c.b16 %v655, %v655
        %v688 = vpack.c.b16 %v656, %v656
        %v689 = vpack.c.b16 %v657, %v657
        %v690 = vpack.c.b16 %v658, %v658
        %v691 = vpack.c.b16 %v659, %v659
        %v692 = vpack.c.b16 %v660, %v660
        %v693 = vpack.c.b16 %v661, %v661
        %v694 = vpack.c.b16 %v662, %v662
        %v695 = vpack.c.b16 %v663, %v663
        %v696 = vpack.c.b16 %v664, %v664
        %v697 = vpack.c.b16 %v665, %v665
        %v698 = vpack.c.b16 %v666, %v666
        %v699 = vpack.c.b16 %v667, %v667
        %v700 = vpack.c.b16 %v668, %v668
        %v701 = vpack.c.b16 %v669, %v669
        %v702 = vpack.c.b16 %v670, %v670
        %735 = vst [vmem:[%s195] sm:$0xf] %v671
        %736 = vst [vmem:[%s195 + $0x4] sm:$0xf] %v672
        %737 = vst [vmem:[%s195 + $0x8] sm:$0xf] %v673
        %738 = vst [vmem:[%s195 + $0xc] sm:$0xf] %v674
        %739 = vst [vmem:[%s195 + $0x10] sm:$0xf] %v675
        %740 = vst [vmem:[%s195 + $0x14] sm:$0xf] %v676
        %741 = vst [vmem:[%s195 + $0x18] sm:$0xf] %v677
        %742 = vst [vmem:[%s195 + $0x1c] sm:$0xf] %v678
        %743 = vst [vmem:[%s195 + $0x20] sm:$0xf] %v679
        %744 = vst [vmem:[%s195 + $0x24] sm:$0xf] %v680
        %745 = vst [vmem:[%s195 + $0x28] sm:$0xf] %v681
        %746 = vst [vmem:[%s195 + $0x2c] sm:$0xf] %v682
        %747 = vst [vmem:[%s195 + $0x30] sm:$0xf] %v683
        %748 = vst [vmem:[%s195 + $0x34] sm:$0xf] %v684
        %749 = vst [vmem:[%s195 + $0x38] sm:$0xf] %v685
        %750 = vst [vmem:[%s195 + $0x3c] sm:$0xf] %v686
        %751 = vst [vmem:[%s195 + $0x40] sm:$0xf] %v687
        %752 = vst [vmem:[%s195 + $0x44] sm:$0xf] %v688
        %753 = vst [vmem:[%s195 + $0x48] sm:$0xf] %v689
        %754 = vst [vmem:[%s195 + $0x4c] sm:$0xf] %v690
        %755 = vst [vmem:[%s195 + $0x50] sm:$0xf] %v691
        %756 = vst [vmem:[%s195 + $0x54] sm:$0xf] %v692
        %757 = vst [vmem:[%s195 + $0x58] sm:$0xf] %v693
        %758 = vst [vmem:[%s195 + $0x5c] sm:$0xf] %v694
        %759 = vst [vmem:[%s195 + $0x60] sm:$0xf] %v695
        %760 = vst [vmem:[%s195 + $0x64] sm:$0xf] %v696
        %761 = vst [vmem:[%s195 + $0x68] sm:$0xf] %v697
        %762 = vst [vmem:[%s195 + $0x6c] sm:$0xf] %v698
        %763 = vst [vmem:[%s195 + $0x70] sm:$0xf] %v699
        %764 = vst [vmem:[%s195 + $0x74] sm:$0xf] %v700
        %765 = vst [vmem:[%s195 + $0x78] sm:$0xf] %v701
        %766 = vst [vmem:[%s195 + $0x7c] sm:$0xf] %v702
        %v767 = vpack.c.bf16 %v423, %v417
        %v768 = vpack.c.bf16 %v435, %v429
        %v769 = vpack.c.bf16 %v447, %v441
        %v770 = vpack.c.bf16 %v459, %v453
        %v771 = vpack.c.bf16 %v471, %v465
        %v772 = vpack.c.bf16 %v483, %v477
        %v773 = vpack.c.bf16 %v495, %v489
        %v774 = vpack.c.bf16 %v507, %v501
        %v775 = vpack.c.bf16 %v519, %v513
        %v776 = vpack.c.bf16 %v531, %v525
        %v777 = vpack.c.bf16 %v543, %v537
        %v778 = vpack.c.bf16 %v555, %v549
        %v779 = vpack.c.bf16 %v567, %v561
        %v780 = vpack.c.bf16 %v579, %v573
        %v781 = vpack.c.bf16 %v591, %v585
        %v782 = vpack.c.bf16 %v603, %v597
        %v799 = vunpack.c.l.b16 %v767
        %v800 = vunpack.c.h.b16 %v767
        %v801 = vunpack.c.l.b16 %v768
        %v802 = vunpack.c.h.b16 %v768
        %v803 = vunpack.c.l.b16 %v769
        %v804 = vunpack.c.h.b16 %v769
        %v805 = vunpack.c.l.b16 %v770
        %v806 = vunpack.c.h.b16 %v770
        %v807 = vunpack.c.l.b16 %v771
        %v808 = vunpack.c.h.b16 %v771
        %v809 = vunpack.c.l.b16 %v772
        %v810 = vunpack.c.h.b16 %v772
        %v811 = vunpack.c.l.b16 %v773
        %v812 = vunpack.c.h.b16 %v773
        %v813 = vunpack.c.l.b16 %v774
        %v814 = vunpack.c.h.b16 %v774
        %v815 = vunpack.c.l.b16 %v775
        %v816 = vunpack.c.h.b16 %v775
        %v817 = vunpack.c.l.b16 %v776
        %v818 = vunpack.c.h.b16 %v776
        %v819 = vunpack.c.l.b16 %v777
        %v820 = vunpack.c.h.b16 %v777
        %v821 = vunpack.c.l.b16 %v778
        %v822 = vunpack.c.h.b16 %v778
        %v823 = vunpack.c.l.b16 %v779
        %v824 = vunpack.c.h.b16 %v779
        %v825 = vunpack.c.l.b16 %v780
        %v826 = vunpack.c.h.b16 %v780
        %v827 = vunpack.c.l.b16 %v781
        %v828 = vunpack.c.h.b16 %v781
        %v829 = vunpack.c.l.b16 %v782
        %v830 = vunpack.c.h.b16 %v782
        %v831 = vpack.c.b16 %v799, %v799
        %v832 = vpack.c.b16 %v800, %v800
        %v833 = vpack.c.b16 %v801, %v801
        %v834 = vpack.c.b16 %v802, %v802
        %v835 = vpack.c.b16 %v803, %v803
        %v836 = vpack.c.b16 %v804, %v804
        %v837 = vpack.c.b16 %v805, %v805
        %v838 = vpack.c.b16 %v806, %v806
        %v839 = vpack.c.b16 %v807, %v807
        %v840 = vpack.c.b16 %v808, %v808
        %v841 = vpack.c.b16 %v809, %v809
        %v842 = vpack.c.b16 %v810, %v810
        %v843 = vpack.c.b16 %v811, %v811
        %v844 = vpack.c.b16 %v812, %v812
        %v845 = vpack.c.b16 %v813, %v813
        %v846 = vpack.c.b16 %v814, %v814
        %v847 = vpack.c.b16 %v815, %v815
        %v848 = vpack.c.b16 %v816, %v816
        %v849 = vpack.c.b16 %v817, %v817
        %v850 = vpack.c.b16 %v818, %v818
        %v851 = vpack.c.b16 %v819, %v819
        %v852 = vpack.c.b16 %v820, %v820
        %v853 = vpack.c.b16 %v821, %v821
        %v854 = vpack.c.b16 %v822, %v822
        %v855 = vpack.c.b16 %v823, %v823
        %v856 = vpack.c.b16 %v824, %v824
        %v857 = vpack.c.b16 %v825, %v825
        %v858 = vpack.c.b16 %v826, %v826
        %v859 = vpack.c.b16 %v827, %v827
        %v860 = vpack.c.b16 %v828, %v828
        %v861 = vpack.c.b16 %v829, %v829
        %v862 = vpack.c.b16 %v830, %v830
        %895 = vst [vmem:[%s202] sm:$0xf] %v831
        %896 = vst [vmem:[%s202 + $0x4] sm:$0xf] %v832
        %897 = vst [vmem:[%s202 + $0x8] sm:$0xf] %v833
        %898 = vst [vmem:[%s202 + $0xc] sm:$0xf] %v834
        %899 = vst [vmem:[%s202 + $0x10] sm:$0xf] %v835
        %900 = vst [vmem:[%s202 + $0x14] sm:$0xf] %v836
        %901 = vst [vmem:[%s202 + $0x18] sm:$0xf] %v837
        %902 = vst [vmem:[%s202 + $0x1c] sm:$0xf] %v838
        %903 = vst [vmem:[%s202 + $0x20] sm:$0xf] %v839
        %904 = vst [vmem:[%s202 + $0x24] sm:$0xf] %v840
        %905 = vst [vmem:[%s202 + $0x28] sm:$0xf] %v841
        %906 = vst [vmem:[%s202 + $0x2c] sm:$0xf] %v842
        %907 = vst [vmem:[%s202 + $0x30] sm:$0xf] %v843
        %908 = vst [vmem:[%s202 + $0x34] sm:$0xf] %v844
        %909 = vst [vmem:[%s202 + $0x38] sm:$0xf] %v845
        %910 = vst [vmem:[%s202 + $0x3c] sm:$0xf] %v846
        %911 = vst [vmem:[%s202 + $0x40] sm:$0xf] %v847
        %912 = vst [vmem:[%s202 + $0x44] sm:$0xf] %v848
        %913 = vst [vmem:[%s202 + $0x48] sm:$0xf] %v849
        %914 = vst [vmem:[%s202 + $0x4c] sm:$0xf] %v850
        %915 = vst [vmem:[%s202 + $0x50] sm:$0xf] %v851
        %916 = vst [vmem:[%s202 + $0x54] sm:$0xf] %v852
        %917 = vst [vmem:[%s202 + $0x58] sm:$0xf] %v853
        %918 = vst [vmem:[%s202 + $0x5c] sm:$0xf] %v854
        %919 = vst [vmem:[%s202 + $0x60] sm:$0xf] %v855
        %920 = vst [vmem:[%s202 + $0x64] sm:$0xf] %v856
        %921 = vst [vmem:[%s202 + $0x68] sm:$0xf] %v857
        %922 = vst [vmem:[%s202 + $0x6c] sm:$0xf] %v858
        %923 = vst [vmem:[%s202 + $0x70] sm:$0xf] %v859
        %924 = vst [vmem:[%s202 + $0x74] sm:$0xf] %v860
        %925 = vst [vmem:[%s202 + $0x78] sm:$0xf] %v861
        %926 = vst [vmem:[%s202 + $0x7c] sm:$0xf] %v862
        %927 = vxpose.xlu0.b32.start [1/16] %v417, 128
        %928 = vxpose.xlu0.b32.cont [2/16] %v423, 128
        %929 = vxpose.xlu0.b32.cont [3/16] %v429, 128
        %930 = vxpose.xlu0.b32.cont [4/16] %v435, 128
        %931 = vxpose.xlu0.b32.cont [5/16] %v441, 128
        %932 = vxpose.xlu0.b32.cont [6/16] %v447, 128
        %933 = vxpose.xlu0.b32.cont [7/16] %v453, 128
        %934 = vxpose.xlu0.b32.cont [8/16] %v459, 128
        %935 = vxpose.xlu0.b32.cont [9/16] %v465, 128
        %936 = vxpose.xlu0.b32.cont [10/16] %v471, 128
        %937 = vxpose.xlu0.b32.cont [11/16] %v477, 128
        %938 = vxpose.xlu0.b32.cont [12/16] %v483, 128
        %939 = vxpose.xlu0.b32.cont [13/16] %v489, 128
        %940 = vxpose.xlu0.b32.cont [14/16] %v495, 128
        %941 = vxpose.xlu0.b32.cont [15/16] %v501, 128
        %942 = vxpose.xlu0.b32.end [16/16] %v507, 128
        %v943 = vpop.trf.xlu0
        %v944 = vpop.trf.xlu0
        %v945 = vpop.trf.xlu0
        %v946 = vpop.trf.xlu0
        %v947 = vpop.trf.xlu0
        %v948 = vpop.trf.xlu0
        %v949 = vpop.trf.xlu0
        %v950 = vpop.trf.xlu0
        %v951 = vpop.trf.xlu0
        %v952 = vpop.trf.xlu0
        %v953 = vpop.trf.xlu0
        %v954 = vpop.trf.xlu0
        %v955 = vpop.trf.xlu0
        %v956 = vpop.trf.xlu0
        %v957 = vpop.trf.xlu0
        %v958 = vpop.trf.xlu0
        %959 = vxpose.xlu0.b32.start [1/16] %v513, 128
        %960 = vxpose.xlu0.b32.cont [2/16] %v519, 128
        %961 = vxpose.xlu0.b32.cont [3/16] %v525, 128
        %962 = vxpose.xlu0.b32.cont [4/16] %v531, 128
        %963 = vxpose.xlu0.b32.cont [5/16] %v537, 128
        %964 = vxpose.xlu0.b32.cont [6/16] %v543, 128
        %965 = vxpose.xlu0.b32.cont [7/16] %v549, 128
        %966 = vxpose.xlu0.b32.cont [8/16] %v555, 128
        %967 = vxpose.xlu0.b32.cont [9/16] %v561, 128
        %968 = vxpose.xlu0.b32.cont [10/16] %v567, 128
        %969 = vxpose.xlu0.b32.cont [11/16] %v573, 128
        %970 = vxpose.xlu0.b32.cont [12/16] %v579, 128
        %971 = vxpose.xlu0.b32.cont [13/16] %v585, 128
        %972 = vxpose.xlu0.b32.cont [14/16] %v591, 128
        %973 = vxpose.xlu0.b32.cont [15/16] %v597, 128
        %974 = vxpose.xlu0.b32.end [16/16] %v603, 128
        %v975 = vpop.trf.xlu0
        %v976 = vpop.trf.xlu0
        %v977 = vpop.trf.xlu0
        %v978 = vpop.trf.xlu0
        %v979 = vpop.trf.xlu0
        %v980 = vpop.trf.xlu0
        %v981 = vpop.trf.xlu0
        %v982 = vpop.trf.xlu0
        %v983 = vpop.trf.xlu0
        %v984 = vpop.trf.xlu0
        %v985 = vpop.trf.xlu0
        %v986 = vpop.trf.xlu0
        %v987 = vpop.trf.xlu0
        %v988 = vpop.trf.xlu0
        %v989 = vpop.trf.xlu0
        %v990 = vpop.trf.xlu0
        %v991 = vpack.c.bf16 %v944, %v943
        %v992 = vpack.c.bf16 %v976, %v975
        %v993 = vpack.c.bf16 %v946, %v945
        %v994 = vpack.c.bf16 %v978, %v977
        %v995 = vpack.c.bf16 %v948, %v947
        %v996 = vpack.c.bf16 %v980, %v979
        %v997 = vpack.c.bf16 %v950, %v949
        %v998 = vpack.c.bf16 %v982, %v981
        %v999 = vpack.c.bf16 %v952, %v951
        %v1000 = vpack.c.bf16 %v984, %v983
        %v1001 = vpack.c.bf16 %v954, %v953
        %v1002 = vpack.c.bf16 %v986, %v985
        %v1003 = vpack.c.bf16 %v956, %v955
        %v1004 = vpack.c.bf16 %v988, %v987
        %v1005 = vpack.c.bf16 %v958, %v957
        %v1006 = vpack.c.bf16 %v990, %v989
        %v1023 = vunpack.c.l.b16 %v991
        %v1024 = vunpack.c.l.b16 %v992
        %v1025 = vunpack.c.h.b16 %v991
        %v1026 = vunpack.c.h.b16 %v992
        %v1027 = vunpack.c.l.b16 %v993
        %v1028 = vunpack.c.l.b16 %v994
        %v1029 = vunpack.c.h.b16 %v993
        %v1030 = vunpack.c.h.b16 %v994
        %v1031 = vunpack.c.l.b16 %v995
        %v1032 = vunpack.c.l.b16 %v996
        %v1033 = vunpack.c.h.b16 %v995
        %v1034 = vunpack.c.h.b16 %v996
        %v1035 = vunpack.c.l.b16 %v997
        %v1036 = vunpack.c.l.b16 %v998
        %v1037 = vunpack.c.h.b16 %v997
        %v1038 = vunpack.c.h.b16 %v998
        %v1039 = vunpack.c.l.b16 %v999
        %v1040 = vunpack.c.l.b16 %v1000
        %v1041 = vunpack.c.h.b16 %v999
        %v1042 = vunpack.c.h.b16 %v1000
        %v1043 = vunpack.c.l.b16 %v1001
        %v1044 = vunpack.c.l.b16 %v1002
        %v1045 = vunpack.c.h.b16 %v1001
        %v1046 = vunpack.c.h.b16 %v1002
        %v1047 = vunpack.c.l.b16 %v1003
        %v1048 = vunpack.c.l.b16 %v1004
        %v1049 = vunpack.c.h.b16 %v1003
        %v1050 = vunpack.c.h.b16 %v1004
        %v1051 = vunpack.c.l.b16 %v1005
        %v1052 = vunpack.c.l.b16 %v1006
        %v1053 = vunpack.c.h.b16 %v1005
        %v1054 = vunpack.c.h.b16 %v1006
        %v1055 = vpack.c.b16 %v1024, %v1023
        %v1056 = vpack.c.b16 %v1026, %v1025
        %v1057 = vpack.c.b16 %v1028, %v1027
        %v1058 = vpack.c.b16 %v1030, %v1029
        %v1059 = vpack.c.b16 %v1032, %v1031
        %v1060 = vpack.c.b16 %v1034, %v1033
        %v1061 = vpack.c.b16 %v1036, %v1035
        %v1062 = vpack.c.b16 %v1038, %v1037
        %v1063 = vpack.c.b16 %v1040, %v1039
        %v1064 = vpack.c.b16 %v1042, %v1041
        %v1065 = vpack.c.b16 %v1044, %v1043
        %v1066 = vpack.c.b16 %v1046, %v1045
        %v1067 = vpack.c.b16 %v1048, %v1047
        %v1068 = vpack.c.b16 %v1050, %v1049
        %v1069 = vpack.c.b16 %v1052, %v1051
        %v1070 = vpack.c.b16 %v1054, %v1053
        %1087 = vst [vmem:[%s209] sm:$0xff] %v1055
        %1088 = vst [vmem:[%s209 + $0x8] sm:$0xff] %v1056
        %1089 = vst [vmem:[%s209 + $0x10] sm:$0xff] %v1057
        %1090 = vst [vmem:[%s209 + $0x18] sm:$0xff] %v1058
        %1091 = vst [vmem:[%s209 + $0x20] sm:$0xff] %v1059
        %1092 = vst [vmem:[%s209 + $0x28] sm:$0xff] %v1060
        %1093 = vst [vmem:[%s209 + $0x30] sm:$0xff] %v1061
        %1094 = vst [vmem:[%s209 + $0x38] sm:$0xff] %v1062
        %1095 = vst [vmem:[%s209 + $0x40] sm:$0xff] %v1063
        %1096 = vst [vmem:[%s209 + $0x48] sm:$0xff] %v1064
        %1097 = vst [vmem:[%s209 + $0x50] sm:$0xff] %v1065
        %1098 = vst [vmem:[%s209 + $0x58] sm:$0xff] %v1066
        %1099 = vst [vmem:[%s209 + $0x60] sm:$0xff] %v1067
        %1100 = vst [vmem:[%s209 + $0x68] sm:$0xff] %v1068
        %1101 = vst [vmem:[%s209 + $0x70] sm:$0xff] %v1069
        %1102 = vst [vmem:[%s209 + $0x78] sm:$0xff] %v1070
        %s1103 = sand.u32 %s77, 1
        %s1104 = scalar_lea.sflag [#allocation3], %s1103
        %s1105 = sand.u32 %s77, 1
        %s1106 = smul.addr %s1105, 128
        %s1107 = scalar_lea.vmem [#allocation2], %s1106
        %s1108 = sand.u32 %s22, 1
        %s1109 = scalar_lea.sflag [#allocation5], %s1108
        %s1110 = sand.u32 %s103, 1
        %s1111 = smul.addr %s1110, 128
        %s1112 = scalar_lea.vmem [#allocation4], %s1111
        %s1113 = sand.u32 %s22, 1
        %s1114 = scalar_lea.sflag [#allocation5], %s1113
        %s1115 = sand.u32 %s129, 1
        %s1116 = smul.addr %s1115, 128
        %s1117 = scalar_lea.vmem [#allocation6], %s1116
        // Predicated region
        $region29: #{tpu_custom_call.1} parent=27 // pred_check
          %p1118 = pneg %p87
        $region30: #{tpu_custom_call.1} parent=27 // pred_check_branch
          %1120 = sbr.rel (%p1118) target = $region32
        $region31: #{tpu_custom_call.1} parent=27 // pred_region
          %s1121 = smul.u32 32, %s22
          %s1123 = ssub.s32 2048, 2048
          %1124 = vsyncadd %s1104, %s1123
          %s1125 = smul.addr %s1121, 64
          %s1126 = scalar_lea.hbm %s2, %s1125
          %s1127 = sshll.u32 %s1107, 4
          %s1128 = int_to_ptr.vmem [resolvable:$true] %s1127
          %1133 = dma.vmem_to_hbm [thread:$0]  %s1128, 2048, %s1126, %s1104, 64, 64, 4
        $region32: #{tpu_custom_call.1} parent=27 // pred_fallthru
          _
        // Predicated region
        $region33: #{tpu_custom_call.1} parent=27 // pred_check
          %p1134 = pneg %p113
        $region34: #{tpu_custom_call.1} parent=27 // pred_check_branch
          %1136 = sbr.rel (%p1134) target = $region36
        $region35: #{tpu_custom_call.1} parent=27 // pred_region
          %s1137 = smul.u32 32, %s22
          %s1139 = ssub.s32 2048, 2048
          %1140 = vsyncadd %s1109, %s1139
          %s1141 = smul.addr %s1137, 64
          %s1142 = scalar_lea.hbm %s3, %s1141
          %s1143 = sshll.u32 %s1112, 4
          %s1144 = int_to_ptr.vmem [resolvable:$true] %s1143
          %1149 = dma.vmem_to_hbm [thread:$0]  %s1144, 2048, %s1142, %s1109, 64, 64, 4
        $region36: #{tpu_custom_call.1} parent=27 // pred_fallthru
          _
        // Predicated region
        $region37: #{tpu_custom_call.1} parent=27 // pred_check
          %p1150 = pneg %p139
        $region38: #{tpu_custom_call.1} parent=27 // pred_check_branch
          %1152 = sbr.rel (%p1150) target = $region40
        $region39: #{tpu_custom_call.1} parent=27 // pred_region
          %s1153 = smul.u32 2, %s22
          %s1155 = ssub.s32 2048, 2048
          %1156 = vsyncadd %s1114, %s1155
          %s1157 = smul.addr %s1153, 64
          %s1158 = scalar_lea.hbm %s4, %s1157
          %s1159 = sshll.u32 %s1117, 4
          %s1160 = int_to_ptr.vmem [resolvable:$true] %s1159
          %1165 = dma.vmem_to_hbm [thread:$0]  %s1160, 2048, %s1158, %s1114, 128, 256, 8
        $region40: #{tpu_custom_call.1} parent=27 // pred_fallthru
          _
      $region28: #{tpu_custom_call.1} parent=5 // pred_fallthru
        _
      %p1166 = scmp.le.s32.totalorder 2, %s17
      // Predicated region
      $region41: #{tpu_custom_call.1} parent=5 // pred_check
        %p1167 = pneg %p1166
      $region42: #{tpu_custom_call.1} parent=5 // pred_check_branch
        %1169 = sbr.rel (%p1167) target = $region44
      $region43: #{tpu_custom_call.1} parent=5 // pred_region
        %s1170 = ssub.s32 %s17, 2
        // Predicated region
        $region45: #{tpu_custom_call.1} parent=43 // pred_check
          %p1171 = pneg %p93
        $region46: #{tpu_custom_call.1} parent=43 // pred_check_branch
          %1173 = sbr.rel (%p1171) target = $region48
        $region47: #{tpu_custom_call.1} parent=43 // pred_region
          %s1174 = sand.u32 %s78, 1
          %s1175 = scalar_lea.sflag [#allocation3], %s1174
          %s1176 = sand.u32 %s78, 1
          %s1177 = smul.addr %s1176, 128
          %s1178 = scalar_lea.vmem [#allocation2], %s1177
          %1179 = dma.done %s1175, 2048
        $region48: #{tpu_custom_call.1} parent=43 // pred_fallthru
          _
        // Predicated region
        $region49: #{tpu_custom_call.1} parent=43 // pred_check
          %p1180 = pneg %p119
        $region50: #{tpu_custom_call.1} parent=43 // pred_check_branch
          %1182 = sbr.rel (%p1180) target = $region52
        $region51: #{tpu_custom_call.1} parent=43 // pred_region
          %s1183 = sand.u32 %s23, 1
          %s1184 = scalar_lea.sflag [#allocation5], %s1183
          %s1185 = sand.u32 %s104, 1
          %s1186 = smul.addr %s1185, 128
          %s1187 = scalar_lea.vmem [#allocation4], %s1186
          %1188 = dma.done %s1184, 2048
        $region52: #{tpu_custom_call.1} parent=43 // pred_fallthru
          _
        // Predicated region
        $region53: #{tpu_custom_call.1} parent=43 // pred_check
          %p1189 = pneg %p145
        $region54: #{tpu_custom_call.1} parent=43 // pred_check_branch
          %1191 = sbr.rel (%p1189) target = $region56
        $region55: #{tpu_custom_call.1} parent=43 // pred_region
          %s1192 = sand.u32 %s23, 1
          %s1193 = scalar_lea.sflag [#allocation5], %s1192
          %s1194 = sand.u32 %s130, 1
          %s1195 = smul.addr %s1194, 128
          %s1196 = scalar_lea.vmem [#allocation6], %s1195
          %1197 = dma.done %s1193, 2048
        $region56: #{tpu_custom_call.1} parent=43 // pred_fallthru
          _
      $region44: #{tpu_custom_call.1} parent=5 // pred_fallthru
        _
    $region6: #{tpu_custom_call.1} parent=1 // loop_footer
      %s21 = sadd.s32 1, %s17
    $region7: #{tpu_custom_call.1} parent=1 // loop_footer_branch
      %16 = sbr.rel target = $region3
    $region8: #{tpu_custom_call.1} parent=1 // loop_exit
      _
    %1198 = vsyncpa [#allocation3], 1
    %s1199 = scalar_lea.sflag [#allocation3], 1
    %1200 = vsyncpa %s1199, 1
    %1201 = vsyncpa [#allocation5], 1
    %s1202 = scalar_lea.sflag [#allocation5], 1
    %1203 = vsyncpa %s1202, 1

</llo_original>
